<compile_context>
chip_gen: v7x
topology: tpu7x:2x2x1
jax: 0.10.0
libtpu: 0.0.40
codegen_flags: <defaults>
</compile_context>

<pallas_src>
from typing import Dict

import jax
import jax.numpy as jnp
from jax.experimental import pallas as pl
from jax.experimental.pallas import tpu as pltpu

LANE = 128
SUBLANE = 8


def _round_up(x: int, m: int) -> int:
    return (x + m - 1) // m * m


def _make_mlp_kernel(n_inputs: int):
    """Fused 2-layer MLP with split-K first matmul (fused concat)."""

    def kernel(*refs):
        x_refs = refs[:n_inputs]
        w1_refs = refs[n_inputs:2 * n_inputs]
        b1_ref, w2_ref, b2_ref, out_ref = refs[2 * n_inputs:]

        # Layer 1: sum of per-input matmuls == concat(x) @ W1 (no concat in HBM).
        acc = jnp.dot(x_refs[0][...], w1_refs[0][...],
                      preferred_element_type=jnp.float32)
        for x_ref, w_ref in zip(x_refs[1:], w1_refs[1:]):
            acc = acc + jnp.dot(x_ref[...], w_ref[...],
                                preferred_element_type=jnp.float32)
        h = jnp.tanh(acc + b1_ref[...].astype(jnp.float32))  # f32 tanh -> EUP slot

        # Layer 2: (tm, h_pad) @ (h_pad, act_dim) -> narrow (tm, act_dim) output
        # (32x less writeback than a 128-lane-padded output for act_dim=4).
        w2 = w2_ref[...]
        if w2.dtype != jnp.float32:
            # Native low-precision MXU path if parameters are bf16 — never
            # upcast the weight tile on the VPU every grid step.
            h = h.astype(w2.dtype)
        a = jnp.dot(h, w2, preferred_element_type=jnp.float32)
        a = a + b2_ref[...].astype(jnp.float32)
        out_ref[...] = a.astype(out_ref.dtype)

    return kernel


def mlp_policy(xs, w1s, b1, w2, b2, *, tile_m: int = 2048, min_tiles=None):
    """Run the fused policy kernel.

    xs : list of (B, D_i) inputs (one per data_dict entry)
    w1s: list of (D_i, H_pad) W1 splits (hidden dim lane-padded, zero pad)
    b1 : (1, H_pad), w2: (H_pad, A), b2: (1, A)
    returns (B, A)
    """
    n_inputs = len(xs)
    B = xs[0].shape[0]
    h_pad = w2.shape[0]
    act_dim = w2.shape[1]

    # Pad the batch only up to the 8-row sublane (<= 7 rows), never to a full
    # tile multiple — Pallas masks the ragged last block on store.
    b_pad = _round_up(B, SUBLANE)
    if b_pad != B:
        xs = [jnp.pad(x, ((0, b_pad - B), (0, 0))) for x in xs]

    # Tile selection: as big as possible (per-grid-step overhead dominates),
    # but split large batches into >= 2 balanced tiles so the "parallel" axis
    # can shard across v7x's two TensorCores.
    if min_tiles is None:
        min_tiles = 2 if b_pad >= 1024 else 1
    n_tiles = max(min_tiles, pl.cdiv(b_pad, tile_m))
    tm = min(_round_up(pl.cdiv(b_pad, n_tiles), SUBLANE), b_pad)
    grid = (pl.cdiv(b_pad, tm),)

    x_specs = [pl.BlockSpec((tm, x.shape[1]), lambda i: (i, 0)) for x in xs]
    # Weights / biases stay VMEM-resident across batch tiles (constant index_map).
    w1_specs = [pl.BlockSpec(w.shape, lambda i: (0, 0)) for w in w1s]
    b1_spec = pl.BlockSpec((1, h_pad), lambda i: (0, 0))
    w2_spec = pl.BlockSpec((h_pad, act_dim), lambda i: (0, 0))
    b2_spec = pl.BlockSpec((1, act_dim), lambda i: (0, 0))
    out_spec = pl.BlockSpec((tm, act_dim), lambda i: (i, 0))

    out = pl.pallas_call(
        _make_mlp_kernel(n_inputs),
        out_shape=jax.ShapeDtypeStruct((b_pad, act_dim), xs[0].dtype),
        grid=grid,
        in_specs=x_specs + w1_specs + [b1_spec, w2_spec, b2_spec],
        out_specs=out_spec,
        compiler_params=pltpu.CompilerParams(
            dimension_semantics=("parallel",),   # shard batch tiles across TCs (v7x)
            vmem_limit_bytes=32 * 1024 * 1024,   # headroom for large tm, incl. v5e
        ),
    )(*xs, *w1s, b1, w2, b2)

    return out[:B] if b_pad != B else out


class PallasModel:
    """Concrete JAX/Pallas stand-in for AquaML's abstract torch Model."""

    def __init__(self, obs_dims: Dict[str, int], hidden: int, act_dim: int,
                 concat_dict: bool = True, dtype=jnp.float32, seed: int = 0):
        self.concat_dict = concat_dict
        self.inputs_name = list(obs_dims.keys())
        self.hidden = hidden
        self.act_dim = act_dim

        d_in = sum(obs_dims.values())
        k1, k2 = jax.random.split(jax.random.PRNGKey(seed))
        # Reference (unpadded) parameters — fan-in scaled like nn.Linear.
        self.w1 = (jax.random.normal(k1, (d_in, hidden), dtype)
                   / jnp.sqrt(jnp.asarray(d_in, dtype)))
        self.b1 = jnp.zeros((hidden,), dtype)
        self.w2 = (jax.random.normal(k2, (hidden, act_dim), dtype)
                   / jnp.sqrt(jnp.asarray(hidden, dtype)))
        self.b2 = jnp.zeros((act_dim,), dtype)

        # Kernel-side parameters: lane-pad only the HIDDEN dim (zero padding is
        # exact: tanh(0)=0 and the padded W2 rows are zero) and split W1 per
        # named input so the concat is fused as a split-K matmul.  The action
        # dim is NOT padded — the output is written narrow to cut HBM writeback.
        h_pad = _round_up(hidden, LANE)
        self._w1_splits = []
        off = 0
        for name in self.inputs_name:
            d = obs_dims[name]
            w = jnp.zeros((d, h_pad), dtype).at[:, :hidden].set(self.w1[off:off + d])
            self._w1_splits.append(w)
            off += d
        self._b1 = jnp.zeros((1, h_pad), dtype).at[0, :hidden].set(self.b1)
        self._w2 = jnp.zeros((h_pad, act_dim), dtype).at[:hidden, :].set(self.w2)
        self._b2 = self.b2.reshape(1, act_dim)

    # --- mirrors Model.compute (the actual math) -------------------------
    def compute(self, data_dict: Dict[str, jax.Array]) -> Dict[str, jax.Array]:
        if self.concat_dict:
            xs = [data_dict[k] for k in self.inputs_name]
        else:
            xs = [data_dict[self.inputs_name[0]]]
        w1s = self._w1_splits[:len(xs)]
        # NOTE: for single-env B~8 inference this path is pallas_call-launch /
        # DMA-latency bound; batch environment steps before calling if possible.
        actions = mlp_policy(xs, w1s, self._b1, self._w2, self._b2)
        return {"actions": actions}

    # --- mirrors Model.act (deterministic: log-prob is None) -------------
    def act(self, data_dict):
        out = self.compute(data_dict)
        return out["actions"], None, out

    # --- mirrors Model.forward -------------------------------------------
    def forward(self, data_dict):
        return self.act(data_dict)

    __call__ = forward


if __name__ == "__main__":
    key = jax.random.PRNGKey(0)
    k_states, k_extra = jax.random.split(key)

    # Small shapes consistent with an RL policy forward pass.
    batch = 8
    obs_dims = {"states": 24, "extra": 8}   # fused "concat" -> 32 input features
    hidden = 32
    act_dim = 4

    data_dict = {
        "states": jax.random.normal(k_states, (batch, obs_dims["states"]), jnp.float32),
        "extra": jax.random.normal(k_extra, (batch, obs_dims["extra"]), jnp.float32),
    }

    model = PallasModel(obs_dims, hidden, act_dim, concat_dict=True, seed=0)
    actions, logprob, extra = model(data_dict)
    actions = jax.block_until_ready(actions)

    # Cross-check against a pure-JAX reference of the same math.
    x = jnp.concatenate([data_dict["states"], data_dict["extra"]], axis=-1)
    ref = jnp.tanh(x @ model.w1 + model.b1) @ model.w2 + model.b2

    assert actions.shape == (batch, act_dim)
    assert logprob is None
    assert jnp.allclose(actions, ref, atol=1e-4, rtol=1e-4), (
        float(jnp.max(jnp.abs(actions - ref))))

    # Second check: multi-tile grid with a ragged last block (no host tile pad).
    batch2 = 200
    k_s2, k_e2 = jax.random.split(jax.random.PRNGKey(1))
    d2 = {
        "states": jax.random.normal(k_s2, (batch2, obs_dims["states"]), jnp.float32),
        "extra": jax.random.normal(k_e2, (batch2, obs_dims["extra"]), jnp.float32),
    }
    a2 = mlp_policy([d2["states"], d2["extra"]], model._w1_splits,
                    model._b1, model._w2, model._b2, tile_m=64)
    a2 = jax.block_until_ready(a2)
    x2 = jnp.concatenate([d2["states"], d2["extra"]], axis=-1)
    ref2 = jnp.tanh(x2 @ model.w1 + model.b1) @ model.w2 + model.b2
    assert a2.shape == (batch2, act_dim)
    assert jnp.allclose(a2, ref2, atol=1e-4, rtol=1e-4), (
        float(jnp.max(jnp.abs(a2 - ref2))))

    print("KERNEL_OK")
</pallas_src>

<mosaic_0001>
module attributes {stable_mosaic.version = 11 : i64} {
  func.func @kernel(%arg0: i32, %arg1: memref<8x24xf32, #tpu.memory_space<vmem>>, %arg2: memref<8x8xf32, #tpu.memory_space<vmem>>, %arg3: memref<24x128xf32, #tpu.memory_space<vmem>>, %arg4: memref<8x128xf32, #tpu.memory_space<vmem>>, %arg5: memref<1x128xf32, #tpu.memory_space<vmem>>, %arg6: memref<128x4xf32, #tpu.memory_space<vmem>>, %arg7: memref<1x4xf32, #tpu.memory_space<vmem>>, %arg8: memref<8x4xf32, #tpu.memory_space<vmem>>) attributes {dimension_semantics = [#tpu.dimension_semantics<parallel>], iteration_bounds = array<i64: 1>, scalar_prefetch = 0 : i64, scratch_operands = 0 : i64, tpu.core_type = #tpu.core_type<tc>, window_params = [{transform_indices = @transform_0, window_bounds = array<i64: 8, 24>}, {transform_indices = @transform_1, window_bounds = array<i64: 8, 8>}, {pipeline_mode = #tpu.pipeline_mode<synchronous>, transform_indices = @transform_2, window_bounds = array<i64: 24, 128>}, {pipeline_mode = #tpu.pipeline_mode<synchronous>, transform_indices = @transform_3, window_bounds = array<i64: 8, 128>}, {pipeline_mode = #tpu.pipeline_mode<synchronous>, transform_indices = @transform_4, window_bounds = array<i64: 1, 128>}, {pipeline_mode = #tpu.pipeline_mode<synchronous>, transform_indices = @transform_5, window_bounds = array<i64: 128, 4>}, {pipeline_mode = #tpu.pipeline_mode<synchronous>, transform_indices = @transform_6, window_bounds = array<i64: 1, 4>}, {transform_indices = @transform_7, window_bounds = array<i64: 8, 4>}]} {
    %c0 = arith.constant 0 : index
    %c0_0 = arith.constant 0 : index
    %0 = vector.load %arg1[%c0, %c0_0] : memref<8x24xf32, #tpu.memory_space<vmem>>, vector<8x24xf32>
    %c0_1 = arith.constant 0 : index
    %c0_2 = arith.constant 0 : index
    %1 = vector.load %arg3[%c0_1, %c0_2] : memref<24x128xf32, #tpu.memory_space<vmem>>, vector<24x128xf32>
    %cst = arith.constant dense<0.000000e+00> : vector<8x128xf32>
    %2 = tpu.matmul %0, %1, %cst {dimension_numbers = #tpu.dot_dimension_numbers<[1], [0], [0], [1], [0, 0, 1, 1], [], []>} : vector<8x24xf32>, vector<24x128xf32>, vector<8x128xf32> -> vector<8x128xf32>
    %c0_3 = arith.constant 0 : index
    %c0_4 = arith.constant 0 : index
    %3 = vector.load %arg2[%c0_3, %c0_4] : memref<8x8xf32, #tpu.memory_space<vmem>>, vector<8x8xf32>
    %c0_5 = arith.constant 0 : index
    %c0_6 = arith.constant 0 : index
    %4 = vector.load %arg4[%c0_5, %c0_6] : memref<8x128xf32, #tpu.memory_space<vmem>>, vector<8x128xf32>
    %cst_7 = arith.constant dense<0.000000e+00> : vector<8x128xf32>
    %5 = tpu.matmul %3, %4, %cst_7 {dimension_numbers = #tpu.dot_dimension_numbers<[1], [0], [0], [1], [0, 0, 1, 1], [], []>} : vector<8x8xf32>, vector<8x128xf32>, vector<8x128xf32> -> vector<8x128xf32>
    %6 = arith.addf %2, %5 : vector<8x128xf32>
    %c0_8 = arith.constant 0 : index
    %c0_9 = arith.constant 0 : index
    %7 = vector.load %arg5[%c0_8, %c0_9] : memref<1x128xf32, #tpu.memory_space<vmem>>, vector<1x128xf32>
    %8 = vector.broadcast %7 : vector<1x128xf32> to vector<8x128xf32>
    %9 = arith.addf %6, %8 : vector<8x128xf32>
    %10 = math.tanh %9 : vector<8x128xf32>
    %c0_10 = arith.constant 0 : index
    %c0_11 = arith.constant 0 : index
    %11 = vector.load %arg6[%c0_10, %c0_11] : memref<128x4xf32, #tpu.memory_space<vmem>>, vector<128x4xf32>
    %cst_12 = arith.constant dense<0.000000e+00> : vector<8x4xf32>
    %12 = tpu.matmul %10, %11, %cst_12 {dimension_numbers = #tpu.dot_dimension_numbers<[1], [0], [0], [1], [0, 0, 1, 1], [], []>} : vector<8x128xf32>, vector<128x4xf32>, vector<8x4xf32> -> vector<8x4xf32>
    %c0_13 = arith.constant 0 : index
    %c0_14 = arith.constant 0 : index
    %13 = vector.load %arg7[%c0_13, %c0_14] : memref<1x4xf32, #tpu.memory_space<vmem>>, vector<1x4xf32>
    %14 = vector.broadcast %13 : vector<1x4xf32> to vector<8x4xf32>
    %15 = arith.addf %12, %14 : vector<8x4xf32>
    %c0_15 = arith.constant 0 : index
    %c0_16 = arith.constant 0 : index
    %16 = vector.load %arg8[%c0_15, %c0_16] : memref<8x4xf32, #tpu.memory_space<vmem>>, vector<8x4xf32>
    tpu.vector_store %arg8[%c0_15, %c0_16], %15 {strides = array<i32>} : memref<8x4xf32, #tpu.memory_space<vmem>>, vector<8x4xf32>,
    return
  }
  func.func @transform_0(%arg0: i32) -> (i32, i32) {
    %c0_i32 = arith.constant 0 : i32
    %c0_i32_0 = arith.constant 0 : i32
    return %arg0, %c0_i32 : i32, i32
  }
  func.func @transform_1(%arg0: i32) -> (i32, i32) {
    %c0_i32 = arith.constant 0 : i32
    %c0_i32_0 = arith.constant 0 : i32
    return %arg0, %c0_i32 : i32, i32
  }
  func.func @transform_2(%arg0: i32) -> (i32, i32) {
    %c0_i32 = arith.constant 0 : i32
    %c0_i32_0 = arith.constant 0 : i32
    %c0_i32_1 = arith.constant 0 : i32
    return %c0_i32, %c0_i32_0 : i32, i32
  }
  func.func @transform_3(%arg0: i32) -> (i32, i32) {
    %c0_i32 = arith.constant 0 : i32
    %c0_i32_0 = arith.constant 0 : i32
    %c0_i32_1 = arith.constant 0 : i32
    return %c0_i32, %c0_i32_0 : i32, i32
  }
  func.func @transform_4(%arg0: i32) -> (i32, i32) {
    %c0_i32 = arith.constant 0 : i32
    %c0_i32_0 = arith.constant 0 : i32
    %c0_i32_1 = arith.constant 0 : i32
    return %c0_i32, %c0_i32_0 : i32, i32
  }
  func.func @transform_5(%arg0: i32) -> (i32, i32) {
    %c0_i32 = arith.constant 0 : i32
    %c0_i32_0 = arith.constant 0 : i32
    %c0_i32_1 = arith.constant 0 : i32
    return %c0_i32, %c0_i32_0 : i32, i32
  }
  func.func @transform_6(%arg0: i32) -> (i32, i32) {
    %c0_i32 = arith.constant 0 : i32
    %c0_i32_0 = arith.constant 0 : i32
    %c0_i32_1 = arith.constant 0 : i32
    return %c0_i32, %c0_i32_0 : i32, i32
  }
  func.func @transform_7(%arg0: i32) -> (i32, i32) {
    %c0_i32 = arith.constant 0 : i32
    %c0_i32_0 = arith.constant 0 : i32
    return %arg0, %c0_i32 : i32, i32
  }
}

</mosaic_0001>

<llo_original>
// kernel: tpu_custom_call.1
$region0: #{tpu_custom_call.1}
  #allocation0 [shape = 'u32[]', space=smem, size = 0x4, offset = 0x4, fixed_abs, tag = 'smem constant byte address 0x4 - core index']
  #allocation1 [shape = 'u32[144,128]{1,0:T(1,128)}', space=vmem, size = 0x12000, scoped, tag = 'internal scratch']
  %s0 = inlined_call_operand.vmem [shape: f32[8,24], index: 0, kind: input, shape index: {}]
  %s1 = inlined_call_operand.vmem [shape: f32[8,8], index: 1, kind: input, shape index: {}]
  %s2 = inlined_call_operand.vmem [shape: f32[24,128], index: 2, kind: input, shape index: {}]
  %s3 = inlined_call_operand.vmem [shape: f32[8,128], index: 3, kind: input, shape index: {}]
  %s4 = inlined_call_operand.vmem [shape: f32[1,128], index: 4, kind: input, shape index: {}]
  %s5 = inlined_call_operand.vmem [shape: f32[128,4], index: 5, kind: input, shape index: {}]
  %s6 = inlined_call_operand.vmem [shape: f32[1,4], index: 6, kind: input, shape index: {}]
  %s7 = inlined_call_operand.vmem [shape: f32[8,4], index: 7, kind: output, shape index: {}]
  %s8 = sld [smem:[#allocation0]]
  $region38: #{tpu_custom_call.1} parent=0
    _
  %s10 = ssub.s32 1, %s8
  %s11 = scalar_select 0, %s10, %s8
  // Predicated region
  $region2: #{tpu_custom_call.1} parent=0 // pred_check
    _
  $region3: #{tpu_custom_call.1} parent=0 // pred_check_branch
    %13 = sbr.rel (0) target = $region5
  $region4: #{tpu_custom_call.1} parent=0 // pred_region
    _
  $region5: #{tpu_custom_call.1} parent=0 // pred_fallthru
    _
  // Predicated region
  $region6: #{tpu_custom_call.1} parent=0 // pred_check
    _
  $region7: #{tpu_custom_call.1} parent=0 // pred_check_branch
    %15 = sbr.rel (0) target = $region9
  $region8: #{tpu_custom_call.1} parent=0 // pred_region
    _
  $region9: #{tpu_custom_call.1} parent=0 // pred_fallthru
    _
  // Predicated region
  $region10: #{tpu_custom_call.1} parent=0 // pred_check
    _
  $region11: #{tpu_custom_call.1} parent=0 // pred_check_branch
    %17 = sbr.rel (0) target = $region13
  $region12: #{tpu_custom_call.1} parent=0 // pred_region
    _
  $region13: #{tpu_custom_call.1} parent=0 // pred_fallthru
    _
  // Predicated region
  $region14: #{tpu_custom_call.1} parent=0 // pred_check
    _
  $region15: #{tpu_custom_call.1} parent=0 // pred_check_branch
    %19 = sbr.rel (0) target = $region17
  $region16: #{tpu_custom_call.1} parent=0 // pred_region
    _
  $region17: #{tpu_custom_call.1} parent=0 // pred_fallthru
    _
  // Predicated region
  $region18: #{tpu_custom_call.1} parent=0 // pred_check
    _
  $region19: #{tpu_custom_call.1} parent=0 // pred_check_branch
    %21 = sbr.rel (0) target = $region21
  $region20: #{tpu_custom_call.1} parent=0 // pred_region
    _
  $region21: #{tpu_custom_call.1} parent=0 // pred_fallthru
    _
  // Predicated region
  $region22: #{tpu_custom_call.1} parent=0 // pred_check
    _
  $region23: #{tpu_custom_call.1} parent=0 // pred_check_branch
    %23 = sbr.rel (0) target = $region25
  $region24: #{tpu_custom_call.1} parent=0 // pred_region
    _
  $region25: #{tpu_custom_call.1} parent=0 // pred_fallthru
    _
  // Predicated region
  $region26: #{tpu_custom_call.1} parent=0 // pred_check
    _
  $region27: #{tpu_custom_call.1} parent=0 // pred_check_branch
    %25 = sbr.rel (0) target = $region29
  $region28: #{tpu_custom_call.1} parent=0 // pred_region
    _
  $region29: #{tpu_custom_call.1} parent=0 // pred_fallthru
    _
  %v26 = vld [vmem:[%s0] sm:$0xff]
  %v27 = vld [vmem:[%s2] sm:$0xff]
  %v28 = vld [vmem:[%s2 + $0x8] sm:$0xff]
  %v29 = vld [vmem:[%s2 + $0x10] sm:$0xff]
  %v30 = vld [vmem:[%s1] sm:$0xff]
  %v31 = vld [vmem:[%s3] sm:$0xff]
  %vm32 = vcmask 64512
  %v34 = vsel %vm32, %v30, 0
  %36 = vmatprep.subr.mxu0 0.0
  %37 = vmatpush1.msra.mxu0 %v31
  %38 = vmatprep.subr.mxu0 0.0
  %39 = vmatpush1.msra.mxu0 0.0
  %40 = vmatprep.subr.mxu0 0.0
  %41 = vmatpush1.msra.mxu0 0.0
  %42 = vmatprep.subr.mxu0 0.0
  %43 = vmatpush1.msra.mxu0 0.0
  %44 = vmatprep.subr.mxu0 0.0
  %45 = vmatpush1.msra.mxu0 0.0
  %46 = vmatprep.subr.mxu0 0.0
  %47 = vmatpush1.msra.mxu0 0.0
  %48 = vmatprep.subr.mxu0 0.0
  %49 = vmatpush1.msra.mxu0 0.0
  %50 = vmatprep.subr.mxu0 0.0
  %51 = vmatpush1.msra.mxu0 0.0
  %52 = vmatprep.subr.mxu0 0.0
  %53 = vmatpush1.msra.mxu0 0.0
  %54 = vmatprep.subr.mxu0 0.0
  %55 = vmatpush1.msra.mxu0 0.0
  %56 = vmatprep.subr.mxu0 0.0
  %57 = vmatpush1.msra.mxu0 0.0
  %58 = vmatprep.subr.mxu0 0.0
  %59 = vmatpush1.msra.mxu0 0.0
  %60 = vmatprep.subr.mxu0 0.0
  %61 = vmatpush1.msra.mxu0 0.0
  %62 = vmatprep.subr.mxu0 0.0
  %63 = vmatpush1.msra.mxu0 0.0
  %64 = vmatprep.subr.mxu0 0.0
  %65 = vmatpush1.msra.mxu0 0.0
  %66 = vmatprep.subr.mxu0 0.0
  %67 = vmatpush1.msra.mxu0 0.0
  %68 = vmatprep.subr.mxu0 0.0
  %69 = vmatpush1.msra.mxu0 0.0
  %70 = vmatprep.subr.mxu0 0.0
  %71 = vmatpush1.msra.mxu0 0.0
  %72 = vmatprep.subr.mxu0 0.0
  %73 = vmatpush1.msra.mxu0 0.0
  %74 = vmatprep.subr.mxu0 0.0
  %75 = vmatpush1.msra.mxu0 0.0
  %76 = vmatprep.subr.mxu0 0.0
  %77 = vmatpush1.msra.mxu0 0.0
  %78 = vmatprep.subr.mxu0 0.0
  %79 = vmatpush1.msra.mxu0 0.0
  %80 = vmatprep.subr.mxu0 0.0
  %81 = vmatpush1.msra.mxu0 0.0
  %82 = vmatprep.subr.mxu0 0.0
  %83 = vmatpush1.msra.mxu0 0.0
  %84 = vmatprep.subr.mxu0 0.0
  %85 = vmatpush1.msra.mxu0 0.0
  %86 = vmatprep.subr.mxu0 0.0
  %87 = vmatpush1.msra.mxu0 0.0
  %88 = vmatprep.subr.mxu0 0.0
  %89 = vmatpush1.msra.mxu0 0.0
  %90 = vmatprep.subr.mxu0 0.0
  %91 = vmatpush1.msra.mxu0 0.0
  %92 = vmatprep.subr.mxu0 0.0
  %93 = vmatpush1.msra.mxu0 0.0
  %94 = vmatprep.subr.mxu0 0.0
  %95 = vmatpush1.msra.mxu0 0.0
  %96 = vmatprep.subr.mxu0 0.0
  %97 = vmatpush1.msra.mxu0 0.0
  %98 = vmatprep.subr.mxu0 0.0
  %99 = vmatpush1.msra.mxu0 0.0
  %100 = vmatprep.mubr.f32.mxu0 0.0
  %101 = vmatmul.mubr.f32.gmra.mrb[0].mxu0 %v34
  %v102 = vpop.f32.mrb[0].mxu0
  %v103 = vadd.f32 0.0, %v102
  %v104 = vpop.f32.mrb[0].mxu0
  %105 = vdwg.mxu0
  %vm106 = vcmask 195584
  %v108 = vsel %vm106, %v26, 0
  %110 = vmatprep.subr.mxu0 0.0
  %111 = vmatpush1.msra.mxu0 %v27
  %112 = vmatprep.subr.mxu0 0.0
  %113 = vmatpush1.msra.mxu0 %v28
  %114 = vmatprep.subr.mxu0 0.0
  %115 = vmatpush1.msra.mxu0 %v29
  %116 = vmatprep.subr.mxu0 0.0
  %117 = vmatpush1.msra.mxu0 0.0
  %118 = vmatprep.subr.mxu0 0.0
  %119 = vmatpush1.msra.mxu0 0.0
  %120 = vmatprep.subr.mxu0 0.0
  %121 = vmatpush1.msra.mxu0 0.0
  %122 = vmatprep.subr.mxu0 0.0
  %123 = vmatpush1.msra.mxu0 0.0
  %124 = vmatprep.subr.mxu0 0.0
  %125 = vmatpush1.msra.mxu0 0.0
  %126 = vmatprep.subr.mxu0 0.0
  %127 = vmatpush1.msra.mxu0 0.0
  %128 = vmatprep.subr.mxu0 0.0
  %129 = vmatpush1.msra.mxu0 0.0
  %130 = vmatprep.subr.mxu0 0.0
  %131 = vmatpush1.msra.mxu0 0.0
  %132 = vmatprep.subr.mxu0 0.0
  %133 = vmatpush1.msra.mxu0 0.0
  %134 = vmatprep.subr.mxu0 0.0
  %135 = vmatpush1.msra.mxu0 0.0
  %136 = vmatprep.subr.mxu0 0.0
  %137 = vmatpush1.msra.mxu0 0.0
  %138 = vmatprep.subr.mxu0 0.0
  %139 = vmatpush1.msra.mxu0 0.0
  %140 = vmatprep.subr.mxu0 0.0
  %141 = vmatpush1.msra.mxu0 0.0
  %142 = vmatprep.subr.mxu0 0.0
  %143 = vmatpush1.msra.mxu0 0.0
  %144 = vmatprep.subr.mxu0 0.0
  %145 = vmatpush1.msra.mxu0 0.0
  %146 = vmatprep.subr.mxu0 0.0
  %147 = vmatpush1.msra.mxu0 0.0
  %148 = vmatprep.subr.mxu0 0.0
  %149 = vmatpush1.msra.mxu0 0.0
  %150 = vmatprep.subr.mxu0 0.0
  %151 = vmatpush1.msra.mxu0 0.0
  %152 = vmatprep.subr.mxu0 0.0
  %153 = vmatpush1.msra.mxu0 0.0
  %154 = vmatprep.subr.mxu0 0.0
  %155 = vmatpush1.msra.mxu0 0.0
  %156 = vmatprep.subr.mxu0 0.0
  %157 = vmatpush1.msra.mxu0 0.0
  %158 = vmatprep.subr.mxu0 0.0
  %159 = vmatpush1.msra.mxu0 0.0
  %160 = vmatprep.subr.mxu0 0.0
  %161 = vmatpush1.msra.mxu0 0.0
  %162 = vmatprep.subr.mxu0 0.0
  %163 = vmatpush1.msra.mxu0 0.0
  %164 = vmatprep.subr.mxu0 0.0
  %165 = vmatpush1.msra.mxu0 0.0
  %166 = vmatprep.subr.mxu0 0.0
  %167 = vmatpush1.msra.mxu0 0.0
  %168 = vmatprep.subr.mxu0 0.0
  %169 = vmatpush1.msra.mxu0 0.0
  %170 = vmatprep.subr.mxu0 0.0
  %171 = vmatpush1.msra.mxu0 0.0
  %172 = vmatprep.subr.mxu0 0.0
  %173 = vmatpush1.msra.mxu0 0.0
  %174 = vmatprep.mubr.f32.mxu0 0.0
  %175 = vmatmul.mubr.f32.gmra.mrb[0].mxu0 %v108
  %v176 = vpop.f32.mrb[0].mxu0
  %v177 = vadd.f32 %v103, %v176
  %v178 = vpop.f32.mrb[0].mxu0
  %179 = vdwg.mxu0
  %v180 = vld [vmem:[%s4] sm:$0x1]
  %v182 = vlaneseq
  %v183 = vshrl.u32 %v182, 7
  %v184 = vsub.s32 0, %v183
  %v185 = vrot.slane %v180, %v184
  %v187 = vadd.f32 %v177, %v185
  %v188 = vtanh.pop %v187
  %v189 = vld [vmem:[%s5] sm:$0xff]
  %v190 = vld [vmem:[%s5 + $0x8] sm:$0xff]
  %v191 = vld [vmem:[%s5 + $0x10] sm:$0xff]
  %v192 = vld [vmem:[%s5 + $0x18] sm:$0xff]
  %v193 = vld [vmem:[%s5 + $0x20] sm:$0xff]
  %v194 = vld [vmem:[%s5 + $0x28] sm:$0xff]
  %v195 = vld [vmem:[%s5 + $0x30] sm:$0xff]
  %v196 = vld [vmem:[%s5 + $0x38] sm:$0xff]
  %v197 = vld [vmem:[%s5 + $0x40] sm:$0xff]
  %v198 = vld [vmem:[%s5 + $0x48] sm:$0xff]
  %v199 = vld [vmem:[%s5 + $0x50] sm:$0xff]
  %v200 = vld [vmem:[%s5 + $0x58] sm:$0xff]
  %v201 = vld [vmem:[%s5 + $0x60] sm:$0xff]
  %v202 = vld [vmem:[%s5 + $0x68] sm:$0xff]
  %v203 = vld [vmem:[%s5 + $0x70] sm:$0xff]
  %v204 = vld [vmem:[%s5 + $0x78] sm:$0xff]
  %v205 = vld [vmem:[%s6] sm:$0x1]
  %v207 = vlaneseq
  %v208 = vshrl.u32 %v207, 7
  %v209 = vsub.s32 0, %v208
  %v210 = vrot.slane %v205, %v209
  %212 = vmatprep.subr.mxu0 0.0
  %213 = vmatpush1.msra.mxu0 %v189
  %214 = vmatprep.subr.mxu0 0.0
  %215 = vmatpush1.msra.mxu0 %v190
  %216 = vmatprep.subr.mxu0 0.0
  %217 = vmatpush1.msra.mxu0 %v191
  %218 = vmatprep.subr.mxu0 0.0
  %219 = vmatpush1.msra.mxu0 %v192
  %220 = vmatprep.subr.mxu0 0.0
  %221 = vmatpush1.msra.mxu0 %v193
  %222 = vmatprep.subr.mxu0 0.0
  %223 = vmatpush1.msra.mxu0 %v194
  %224 = vmatprep.subr.mxu0 0.0
  %225 = vmatpush1.msra.mxu0 %v195
  %226 = vmatprep.subr.mxu0 0.0
  %227 = vmatpush1.msra.mxu0 %v196
  %228 = vmatprep.subr.mxu0 0.0
  %229 = vmatpush1.msra.mxu0 %v197
  %230 = vmatprep.subr.mxu0 0.0
  %231 = vmatpush1.msra.mxu0 %v198
  %232 = vmatprep.subr.mxu0 0.0
  %233 = vmatpush1.msra.mxu0 %v199
  %234 = vmatprep.subr.mxu0 0.0
  %235 = vmatpush1.msra.mxu0 %v200
  %236 = vmatprep.subr.mxu0 0.0
  %237 = vmatpush1.msra.mxu0 %v201
  %238 = vmatprep.subr.mxu0 0.0
  %239 = vmatpush1.msra.mxu0 %v202
  %240 = vmatprep.subr.mxu0 0.0
  %241 = vmatpush1.msra.mxu0 %v203
  %242 = vmatprep.subr.mxu0 0.0
  %243 = vmatpush1.msra.mxu0 %v204
  %244 = vmatprep.subr.mxu0 0.0
  %245 = vmatpush1.msra.mxu0 0.0
  %246 = vmatprep.subr.mxu0 0.0
  %247 = vmatpush1.msra.mxu0 0.0
  %248 = vmatprep.subr.mxu0 0.0
  %249 = vmatpush1.msra.mxu0 0.0
  %250 = vmatprep.subr.mxu0 0.0
  %251 = vmatpush1.msra.mxu0 0.0
  %252 = vmatprep.subr.mxu0 0.0
  %253 = vmatpush1.msra.mxu0 0.0
  %254 = vmatprep.subr.mxu0 0.0
  %255 = vmatpush1.msra.mxu0 0.0
  %256 = vmatprep.subr.mxu0 0.0
  %257 = vmatpush1.msra.mxu0 0.0
  %258 = vmatprep.subr.mxu0 0.0
  %259 = vmatpush1.msra.mxu0 0.0
  %260 = vmatprep.subr.mxu0 0.0
  %261 = vmatpush1.msra.mxu0 0.0
  %262 = vmatprep.subr.mxu0 0.0
  %263 = vmatpush1.msra.mxu0 0.0
  %264 = vmatprep.subr.mxu0 0.0
  %265 = vmatpush1.msra.mxu0 0.0
  %266 = vmatprep.subr.mxu0 0.0
  %267 = vmatpush1.msra.mxu0 0.0
  %268 = vmatprep.subr.mxu0 0.0
  %269 = vmatpush1.msra.mxu0 0.0
  %270 = vmatprep.subr.mxu0 0.0
  %271 = vmatpush1.msra.mxu0 0.0
  %272 = vmatprep.subr.mxu0 0.0
  %273 = vmatpush1.msra.mxu0 0.0
  %274 = vmatprep.subr.mxu0 0.0
  %275 = vmatpush1.msra.mxu0 0.0
  %276 = vmatprep.mubr.f32.mxu0 0.0
  %277 = vmatmul.mubr.f32.gmra.mrb[0].mxu0 %v188
  %v278 = vpop.f32.mrb[0].mxu0
  %v279 = vadd.f32 %v210, %v278
  %v280 = vpop.f32.mrb[0].mxu0
  %281 = vdwg.mxu0
  %vm282 = vcmask 31744
  %283 = vst.msk [vmem:[%s7] sm:$0xff] %vm282, %v279
  // Predicated region
  $region30: #{tpu_custom_call.1} parent=0 // pred_check
    _
  $region31: #{tpu_custom_call.1} parent=0 // pred_check_branch
    %285 = sbr.rel (0) target = $region33
  $region32: #{tpu_custom_call.1} parent=0 // pred_region
    _
  $region33: #{tpu_custom_call.1} parent=0 // pred_fallthru
    _
  // Predicated region
  $region34: #{tpu_custom_call.1} parent=0 // pred_check
    _
  $region35: #{tpu_custom_call.1} parent=0 // pred_check_branch
    %287 = sbr.rel (0) target = $region37
  $region36: #{tpu_custom_call.1} parent=0 // pred_region
    _
  $region37: #{tpu_custom_call.1} parent=0 // pred_fallthru
    _

</llo_original>
